<compile_context>
chip_gen: v5e
topology: v5e:2x2
jax: 0.10.0
libtpu: 0.0.40
codegen_flags: <defaults>
</compile_context>

<pallas_src>
import functools

import jax
import jax.numpy as jnp
from jax import lax
from jax.experimental import pallas as pl
from jax.experimental.pallas import tpu as pltpu

_MIB = 1024 * 1024


def _tpu_vmem_capacity_bytes():
    try:
        return int(pltpu.get_tpu_info().vmem_capacity_bytes)
    except Exception:
        return 64 * _MIB  # v7x per-core VMEM; conservative default


def _pick_hw_tile(hw, c_sp, c_cp, cout, in_bytes, out_bytes, budget):
    """Largest HW tile whose double-buffered footprint fits `budget`.

    Tiles are multiples of 16 (bf16 feat blocks need 16-row sublane alignment
    unless the block spans the full dim); a tile >= HW collapses to the full
    extent, which is always a legal block shape."""
    weights = 2 * ((c_sp + c_cp) * cout * 2 + cout * 4)
    per_row = 2 * ((c_sp + c_cp) * in_bytes      # double-buffered activations
                   + 2 * cout * 2                # feat bf16 (written p1, read p2)
                   + cout * out_bytes)           # pass-2 output
    for t in (2048, 1024, 512, 256, 128, 64, 32, 16):
        if weights + t * per_row <= budget:
            return hw if t >= hw else t
    return min(hw, 16)


# ---------------------------------------------------------------------------
# Pass 1: feat = relu(fsp @ Wsp + fcp @ Wcp + bias); accumulate channel sums.
# ---------------------------------------------------------------------------
def _ffm_pass1_kernel(fsp_ref, fcp_ref, wsp_ref, wcp_ref, bias_ref,
                      feat_ref, sum_ref, *, hw, hw_tile, tiles_per_chunk,
                      ragged):
    # fsp_ref : (1, T, Csp)      activation tile (f32 or bf16 -> bf16)
    # fcp_ref : (1, T, Ccp)
    # wsp_ref : (Csp, Cout)      bf16, BN scale pre-folded
    # wcp_ref : (Ccp, Cout)      bf16, BN scale pre-folded
    # bias_ref: (1, Cout)        f32 folded BN bias
    # feat_ref: (1, T, Cout)     bf16 intermediate
    # sum_ref : (1, 1, 1, Cout)  f32 per-(image, chunk) channel-sum accumulator
    chunk = pl.program_id(1)
    t = pl.program_id(2)

    xsp = fsp_ref[0].astype(jnp.bfloat16)
    xcp = fcp_ref[0].astype(jnp.bfloat16)
    # Two K-split matmuls (identical to the concat'd conv).  A single
    # K = Csp+Ccp matmul would fill the 256-deep v6e/v7x MXU better, but this
    # pass is HBM-bound, so an in-VMEM concat is not worth its copy.
    pre = (jnp.dot(xsp, wsp_ref[...], preferred_element_type=jnp.float32) +
           jnp.dot(xcp, wcp_ref[...], preferred_element_type=jnp.float32))
    feat = jnp.maximum(pre + bias_ref[...], 0.0)          # (T, Cout) f32

    feat_ref[0] = feat.astype(feat_ref.dtype)             # OOB rows are dropped

    @pl.when(t == 0)
    def _():
        sum_ref[...] = jnp.zeros_like(sum_ref)

    if ragged:  # mask rows past HW out of the pooling sum (ragged last tile)
        start = (chunk * tiles_per_chunk + t) * hw_tile
        row = lax.broadcasted_iota(jnp.int32, (hw_tile, 1), 0)
        feat = jnp.where(row < hw - start, feat, 0.0)
    sum_ref[0, 0] += jnp.sum(feat, axis=0, keepdims=True)  # f32 accumulation


# ---------------------------------------------------------------------------
# Pass 2: out = feat * gate   (gate = sigmoid(SE(mean)) + 1, precomputed)
# ---------------------------------------------------------------------------
def _ffm_pass2_kernel(gate_ref, feat_ref, out_ref):
    # gate_ref: (1, 1, Cout) f32 ; feat_ref: (1, T, Cout) bf16 ; out_ref bf16/f32
    out_ref[0] = (feat_ref[0].astype(jnp.float32) *
                  gate_ref[0]).astype(out_ref.dtype)


def feature_fusion_module(fsp, fcp, params, *, out_dtype=jnp.bfloat16,
                          hw_tile=None):
    """fsp: (N, H, W, C_sp), fcp: (N, H, W, C_cp); NHWC, f32 or bf16."""
    N, H, W, c_sp = fsp.shape
    c_cp = fcp.shape[-1]
    HW = H * W

    wblk = params["wblk"]            # (Cin, Cout) f32
    scale = params["bn_scale"]       # (1, Cout)
    bias = params["bn_bias"]         # (1, Cout)
    w1 = params["w1"]                # (Cout, Cmid)
    w2 = params["w2"]                # (Cmid, Cout)
    Cout = wblk.shape[1]

    in_bytes = max(fsp.dtype.itemsize, fcp.dtype.itemsize)
    out_bytes = jnp.dtype(out_dtype).itemsize

    # Generation-aware VMEM budget (128 MiB on v5e/v6e, 64 MiB on v7x).
    vmem_cap = _tpu_vmem_capacity_bytes()
    vmem_limit = min(int(vmem_cap * 3 // 4), 96 * _MIB)

    if hw_tile is None:
        T = _pick_hw_tile(HW, c_sp, c_cp, Cout, in_bytes, out_bytes,
                          vmem_limit // 2)
    else:
        T = min(int(hw_tile), HW)
        assert T == HW or T % 16 == 0, "hw_tile must be a multiple of 16"

    n_tiles = -(-HW // T)                      # cdiv grid, ragged tile masked
    ragged = (HW % T) != 0
    # Split HW tiles into two parallel chunks so both v7x TensorCores get work
    # on pass 1 even when N == 1 (no cost on single-core v5e/v6e).
    n_chunks = 2 if (n_tiles >= 2 and n_tiles % 2 == 0) else 1
    tiles_per_chunk = n_tiles // n_chunks

    # Fold BN scale into the conv weight columns; split for the concat-free
    # matmul; store bf16 for the MXU.
    wsp = (wblk[:c_sp] * scale).astype(jnp.bfloat16)     # (Csp, Cout)
    wcp = (wblk[c_sp:] * scale).astype(jnp.bfloat16)     # (Ccp, Cout)
    bias = bias.astype(jnp.float32)

    # NHWC -> (N, HW, C) is a free reshape (no transpose, no copy).
    fsp2 = fsp.reshape(N, HW, c_sp)
    fcp2 = fcp.reshape(N, HW, c_cp)

    p1 = functools.partial(_ffm_pass1_kernel, hw=HW, hw_tile=T,
                           tiles_per_chunk=tiles_per_chunk, ragged=ragged)
    feat, sums = pl.pallas_call(
        p1,
        out_shape=(jax.ShapeDtypeStruct((N, HW, Cout), jnp.bfloat16),
                   jax.ShapeDtypeStruct((N, n_chunks, 1, Cout), jnp.float32)),
        grid_spec=pltpu.PrefetchScalarGridSpec(
            num_scalar_prefetch=0,
            grid=(N, n_chunks, tiles_per_chunk),
            in_specs=[
                pl.BlockSpec((1, T, c_sp),
                             lambda n, c, t: (n, c * tiles_per_chunk + t, 0)),
                pl.BlockSpec((1, T, c_cp),
                             lambda n, c, t: (n, c * tiles_per_chunk + t, 0)),
                pl.BlockSpec((c_sp, Cout), lambda n, c, t: (0, 0)),
                pl.BlockSpec((c_cp, Cout), lambda n, c, t: (0, 0)),
                pl.BlockSpec((1, Cout), lambda n, c, t: (0, 0)),
            ],
            out_specs=[
                pl.BlockSpec((1, T, Cout),
                             lambda n, c, t: (n, c * tiles_per_chunk + t, 0)),
                pl.BlockSpec((1, 1, 1, Cout), lambda n, c, t: (n, c, 0, 0)),
            ],
        ),
        compiler_params=pltpu.CompilerParams(
            dimension_semantics=("parallel", "parallel", "arbitrary"),
            vmem_limit_bytes=vmem_limit),
    )(fsp2, fcp2, wsp, wcp, bias)

    # Tiny per-image SE gate, hoisted out of the tiled passes (plain jnp on the
    # (N, Cout) sums; combines the per-chunk partial sums from pass 1).
    avg = jnp.sum(sums, axis=(1, 2)) * (1.0 / HW)                  # (N, Cout)
    a1 = jnp.maximum(jnp.dot(avg, w1, preferred_element_type=jnp.float32), 0.0)
    gate = jax.nn.sigmoid(
        jnp.dot(a1, w2, preferred_element_type=jnp.float32)) + 1.0
    gate = gate.reshape(N, 1, Cout).astype(jnp.float32)

    out = pl.pallas_call(
        _ffm_pass2_kernel,
        out_shape=jax.ShapeDtypeStruct((N, HW, Cout), out_dtype),
        grid_spec=pltpu.PrefetchScalarGridSpec(
            num_scalar_prefetch=0,
            grid=(N, n_tiles),
            in_specs=[
                pl.BlockSpec((1, 1, Cout), lambda n, t: (n, 0, 0)),
                pl.BlockSpec((1, T, Cout), lambda n, t: (n, t, 0)),
            ],
            out_specs=pl.BlockSpec((1, T, Cout), lambda n, t: (n, t, 0)),
        ),
        compiler_params=pltpu.CompilerParams(
            dimension_semantics=("parallel", "parallel"),
            vmem_limit_bytes=vmem_limit),
    )(gate, feat)

    return out.reshape(N, H, W, Cout)


def init_params(key, in_chan, out_chan):
    """Deterministic init matching the PyTorch module.

    Conv weights stored as (in, out) matmul weights (transposed 1x1 kernels);
    kaiming_normal_(a=1) => std = 1/sqrt(fan_in).  BN is inference mode with
    gamma=1, beta=0, running stats (0, 1), folded to (scale, bias)."""
    k1, k2, k3 = jax.random.split(key, 3)
    eps = 1e-5
    wblk = jax.random.normal(k1, (in_chan, out_chan), jnp.float32) / jnp.sqrt(
        jnp.float32(in_chan))
    w1 = jax.random.normal(k2, (out_chan, out_chan // 4), jnp.float32) / jnp.sqrt(
        jnp.float32(out_chan))
    w2 = jax.random.normal(k3, (out_chan // 4, out_chan), jnp.float32) / jnp.sqrt(
        jnp.float32(out_chan // 4))
    gamma = jnp.ones((out_chan,), jnp.float32)
    beta = jnp.zeros((out_chan,), jnp.float32)
    running_mean = jnp.zeros((out_chan,), jnp.float32)
    running_var = jnp.ones((out_chan,), jnp.float32)
    scale = gamma / jnp.sqrt(running_var + eps)
    bias = beta - running_mean * scale
    return {
        "wblk": wblk,
        "bn_scale": scale.reshape(1, out_chan),
        "bn_bias": bias.reshape(1, out_chan),
        "w1": w1,
        "w2": w2,
    }


def _reference_matched(fsp, fcp, params, out_dtype=jnp.bfloat16):
    """Pure-JAX reference mimicking the kernel's precision choices."""
    N, H, W, c_sp = fsp.shape
    c_cp = fcp.shape[-1]
    scale = params["bn_scale"]
    bias = params["bn_bias"]
    wsp = (params["wblk"][:c_sp] * scale).astype(jnp.bfloat16)
    wcp = (params["wblk"][c_sp:] * scale).astype(jnp.bfloat16)
    xsp = fsp.reshape(N, H * W, c_sp).astype(jnp.bfloat16)
    xcp = fcp.reshape(N, H * W, c_cp).astype(jnp.bfloat16)
    pre = (jnp.einsum("npc,co->npo", xsp, wsp, preferred_element_type=jnp.float32)
           + jnp.einsum("npc,co->npo", xcp, wcp,
                        preferred_element_type=jnp.float32))
    feat = jnp.maximum(pre + bias, 0.0)                    # f32
    feat16 = feat.astype(jnp.bfloat16)
    avg = jnp.mean(feat, axis=1)                           # f32 pooling
    a1 = jnp.maximum(avg @ params["w1"], 0.0)
    gate = jax.nn.sigmoid(a1 @ params["w2"]) + 1.0
    out = (feat16.astype(jnp.float32) * gate[:, None, :]).astype(out_dtype)
    return out.reshape(N, H, W, -1).astype(jnp.float32)


def _reference_f32(fsp, fcp, params):
    """Full-precision reference of the module semantics."""
    fcat = jnp.concatenate([fsp.astype(jnp.float32), fcp.astype(jnp.float32)],
                           axis=-1)
    pre = jnp.einsum("nhwi,io->nhwo", fcat, params["wblk"])
    feat = jnp.maximum(pre * params["bn_scale"][0] + params["bn_bias"][0], 0.0)
    avg = jnp.mean(feat, axis=(1, 2), keepdims=True)
    a1 = jnp.maximum(jnp.einsum("nhwi,io->nhwo", avg, params["w1"]), 0.0)
    a2 = jax.nn.sigmoid(jnp.einsum("nhwi,io->nhwo", a1, params["w2"]))
    return feat * a2 + feat


if __name__ == "__main__":
    key = jax.random.PRNGKey(0)
    k1, k2, k3, k4, k5, k6 = jax.random.split(key, 6)

    # Case 1: lane-dense channels (Cout = 128), HW covered by one full tile.
    N, H, W, c_sp, c_cp, out_chan = 2, 16, 16, 64, 64, 128
    fsp = jax.random.normal(k1, (N, H, W, c_sp), jnp.float32)
    fcp = jax.random.normal(k2, (N, H, W, c_cp), jnp.float32)
    params = init_params(k3, c_sp + c_cp, out_chan)
    out = jax.block_until_ready(feature_fusion_module(fsp, fcp, params))
    assert out.shape == (N, H, W, out_chan)
    assert out.dtype == jnp.bfloat16
    out32 = out.astype(jnp.float32)
    ref_m = _reference_matched(fsp, fcp, params)
    assert jnp.allclose(out32, ref_m, atol=2e-2, rtol=2e-2), \
        "case1 mismatch vs matched-precision reference"
    ref_f = _reference_f32(fsp, fcp, params)
    assert jnp.allclose(out32, ref_f, atol=8e-2, rtol=8e-2), \
        "case1 mismatch vs f32 reference"

    # Case 2: bf16 inputs, ragged HW (cdiv grid + in-kernel mask) and the
    # two-chunk parallel split of the HW axis (keeps both v7x cores busy).
    N2, H2, W2, c_sp2, c_cp2, out2 = 1, 12, 20, 48, 16, 64
    fsp2 = jax.random.normal(k4, (N2, H2, W2, c_sp2),
                             jnp.float32).astype(jnp.bfloat16)
    fcp2 = jax.random.normal(k5, (N2, H2, W2, c_cp2),
                             jnp.float32).astype(jnp.bfloat16)
    params2 = init_params(k6, c_sp2 + c_cp2, out2)
    out_r = jax.block_until_ready(
        feature_fusion_module(fsp2, fcp2, params2, hw_tile=128))
    assert out_r.shape == (N2, H2, W2, out2)
    ref_m2 = _reference_matched(fsp2, fcp2, params2)
    assert jnp.allclose(out_r.astype(jnp.float32), ref_m2, atol=2e-2, rtol=2e-2), \
        "case2 mismatch vs matched-precision reference"

    print("KERNEL_OK")
</pallas_src>

<mosaic_0001>
module attributes {stable_mosaic.version = 11 : i64} {
  func.func @_ffm_pass1_kernel(%arg0: i32, %arg1: i32, %arg2: i32, %arg3: memref<1x256x64xf32, #tpu.memory_space<vmem>>, %arg4: memref<1x256x64xf32, #tpu.memory_space<vmem>>, %arg5: memref<64x128xbf16, #tpu.memory_space<vmem>>, %arg6: memref<64x128xbf16, #tpu.memory_space<vmem>>, %arg7: memref<1x128xf32, #tpu.memory_space<vmem>>, %arg8: memref<1x256x128xbf16, #tpu.memory_space<vmem>>, %arg9: memref<1x1x1x128xf32, #tpu.memory_space<vmem>>) attributes {dimension_semantics = [#tpu.dimension_semantics<parallel>, #tpu.dimension_semantics<parallel>, #tpu.dimension_semantics<arbitrary>], iteration_bounds = array<i64: 2, 1, 1>, scalar_prefetch = 0 : i64, scratch_operands = 0 : i64, tpu.core_type = #tpu.core_type<tc>, window_params = [{transform_indices = @transform_0, window_bounds = array<i64: 1, 256, 64>}, {transform_indices = @transform_1, window_bounds = array<i64: 1, 256, 64>}, {pipeline_mode = #tpu.pipeline_mode<synchronous>, transform_indices = @transform_2, window_bounds = array<i64: 64, 128>}, {pipeline_mode = #tpu.pipeline_mode<synchronous>, transform_indices = @transform_3, window_bounds = array<i64: 64, 128>}, {pipeline_mode = #tpu.pipeline_mode<synchronous>, transform_indices = @transform_4, window_bounds = array<i64: 1, 128>}, {transform_indices = @transform_5, window_bounds = array<i64: 1, 256, 128>}, {transform_indices = @transform_6, window_bounds = array<i64: 1, 1, 1, 128>}]} {
    %c0 = arith.constant 0 : index
    %c0_0 = arith.constant 0 : index
    %c0_1 = arith.constant 0 : index
    %0 = vector.load %arg3[%c0, %c0_0, %c0_1] : memref<1x256x64xf32, #tpu.memory_space<vmem>>, vector<1x256x64xf32>
    %1 = vector.shape_cast %0 : vector<1x256x64xf32> to vector<256x64xf32>
    %2 = arith.truncf %1 : vector<256x64xf32> to vector<256x64xbf16>
    %c0_2 = arith.constant 0 : index
    %c0_3 = arith.constant 0 : index
    %c0_4 = arith.constant 0 : index
    %3 = vector.load %arg4[%c0_2, %c0_3, %c0_4] : memref<1x256x64xf32, #tpu.memory_space<vmem>>, vector<1x256x64xf32>
    %4 = vector.shape_cast %3 : vector<1x256x64xf32> to vector<256x64xf32>
    %5 = arith.truncf %4 : vector<256x64xf32> to vector<256x64xbf16>
    %c0_5 = arith.constant 0 : index
    %c0_6 = arith.constant 0 : index
    %6 = vector.load %arg5[%c0_5, %c0_6] : memref<64x128xbf16, #tpu.memory_space<vmem>>, vector<64x128xbf16>
    %cst = arith.constant dense<0.000000e+00> : vector<256x128xf32>
    %7 = tpu.matmul %2, %6, %cst {dimension_numbers = #tpu.dot_dimension_numbers<[1], [0], [0], [1], [0, 0, 1, 1], [], []>} : vector<256x64xbf16>, vector<64x128xbf16>, vector<256x128xf32> -> vector<256x128xf32>
    %c0_7 = arith.constant 0 : index
    %c0_8 = arith.constant 0 : index
    %8 = vector.load %arg6[%c0_7, %c0_8] : memref<64x128xbf16, #tpu.memory_space<vmem>>, vector<64x128xbf16>
    %cst_9 = arith.constant dense<0.000000e+00> : vector<256x128xf32>
    %9 = tpu.matmul %5, %8, %cst_9 {dimension_numbers = #tpu.dot_dimension_numbers<[1], [0], [0], [1], [0, 0, 1, 1], [], []>} : vector<256x64xbf16>, vector<64x128xbf16>, vector<256x128xf32> -> vector<256x128xf32>
    %10 = arith.addf %7, %9 : vector<256x128xf32>
    %c0_10 = arith.constant 0 : index
    %c0_11 = arith.constant 0 : index
    %11 = vector.load %arg7[%c0_10, %c0_11] : memref<1x128xf32, #tpu.memory_space<vmem>>, vector<1x128xf32>
    %12 = vector.broadcast %11 : vector<1x128xf32> to vector<256x128xf32>
    %13 = arith.addf %10, %12 : vector<256x128xf32>
    %cst_12 = arith.constant 0.000000e+00 : f32
    %14 = vector.broadcast %cst_12 : f32 to vector<256x128xf32>
    %15 = arith.maximumf %13, %14 : vector<256x128xf32>
    %16 = arith.truncf %15 : vector<256x128xf32> to vector<256x128xbf16>
    %c0_13 = arith.constant 0 : index
    %c0_14 = arith.constant 0 : index
    %c0_15 = arith.constant 0 : index
    %17 = vector.load %arg8[%c0_13, %c0_14, %c0_15] : memref<1x256x128xbf16, #tpu.memory_space<vmem>>, vector<1x256x128xbf16>
    %18 = vector.shape_cast %17 : vector<1x256x128xbf16> to vector<256x128xbf16>
    %19 = vector.shape_cast %16 : vector<256x128xbf16> to vector<1x256x128xbf16>
    tpu.vector_store %arg8[%c0_13, %c0_14, %c0_15], %19 {strides = array<i32>} : memref<1x256x128xbf16, #tpu.memory_space<vmem>>, vector<1x256x128xbf16>,
    %c0_i32 = arith.constant 0 : i32
    %20 = arith.cmpi eq, %arg2, %c0_i32 : i32
    %21 = arith.extui %20 : i1 to i32
    %c0_i32_16 = arith.constant 0 : i32
    %22 = arith.cmpi ne, %21, %c0_i32_16 : i32
    scf.if %22 {
      %cst_26 = arith.constant 0.000000e+00 : f32
      %31 = vector.broadcast %cst_26 : f32 to vector<1x1x1x128xf32>
      %c0_27 = arith.constant 0 : index
      %c0_28 = arith.constant 0 : index
      %c0_29 = arith.constant 0 : index
      %c0_30 = arith.constant 0 : index
      %32 = vector.load %arg9[%c0_27, %c0_28, %c0_29, %c0_30] : memref<1x1x1x128xf32, #tpu.memory_space<vmem>>, vector<1x1x1x128xf32>
      tpu.vector_store %arg9[%c0_27, %c0_28, %c0_29, %c0_30], %31 {strides = array<i32>} : memref<1x1x1x128xf32, #tpu.memory_space<vmem>>, vector<1x1x1x128xf32>,
    } else {
    }
    %c0_17 = arith.constant 0 : index
    %c0_18 = arith.constant 0 : index
    %c0_19 = arith.constant 0 : index
    %c0_20 = arith.constant 0 : index
    %23 = vector.load %arg9[%c0_17, %c0_18, %c0_19, %c0_20] : memref<1x1x1x128xf32, #tpu.memory_space<vmem>>, vector<1x1x1x128xf32>
    %24 = vector.shape_cast %23 : vector<1x1x1x128xf32> to vector<1x128xf32>
    %cst_21 = arith.constant dense<0.000000e+00> : vector<128xf32>
    %25 = vector.multi_reduction <add>, %15, %cst_21 [0] : vector<256x128xf32> to vector<128xf32>
    %26 = vector.shape_cast %25 : vector<128xf32> to vector<1x128xf32>
    %27 = arith.addf %24, %26 : vector<1x128xf32>
    %c0_22 = arith.constant 0 : index
    %c0_23 = arith.constant 0 : index
    %c0_24 = arith.constant 0 : index
    %c0_25 = arith.constant 0 : index
    %28 = vector.load %arg9[%c0_22, %c0_23, %c0_24, %c0_25] : memref<1x1x1x128xf32, #tpu.memory_space<vmem>>, vector<1x1x1x128xf32>
    %29 = vector.shape_cast %28 : vector<1x1x1x128xf32> to vector<1x128xf32>
    %30 = vector.shape_cast %27 : vector<1x128xf32> to vector<1x1x1x128xf32>
    tpu.vector_store %arg9[%c0_22, %c0_23, %c0_24, %c0_25], %30 {strides = array<i32>} : memref<1x1x1x128xf32, #tpu.memory_space<vmem>>, vector<1x1x1x128xf32>,
    return
  }
  func.func @transform_0(%arg0: i32, %arg1: i32, %arg2: i32) -> (i32, i32, i32) {
    %c1_i32 = arith.constant 1 : i32
    %0 = arith.muli %arg1, %c1_i32 : i32
    %1 = arith.addi %0, %arg2 : i32
    %c0_i32 = arith.constant 0 : i32
    %c0_i32_0 = arith.constant 0 : i32
    return %arg0, %1, %c0_i32 : i32, i32, i32
  }
  func.func @transform_1(%arg0: i32, %arg1: i32, %arg2: i32) -> (i32, i32, i32) {
    %c1_i32 = arith.constant 1 : i32
    %0 = arith.muli %arg1, %c1_i32 : i32
    %1 = arith.addi %0, %arg2 : i32
    %c0_i32 = arith.constant 0 : i32
    %c0_i32_0 = arith.constant 0 : i32
    return %arg0, %1, %c0_i32 : i32, i32, i32
  }
  func.func @transform_2(%arg0: i32, %arg1: i32, %arg2: i32) -> (i32, i32) {
    %c0_i32 = arith.constant 0 : i32
    %c0_i32_0 = arith.constant 0 : i32
    %c0_i32_1 = arith.constant 0 : i32
    return %c0_i32, %c0_i32_0 : i32, i32
  }
  func.func @transform_3(%arg0: i32, %arg1: i32, %arg2: i32) -> (i32, i32) {
    %c0_i32 = arith.constant 0 : i32
    %c0_i32_0 = arith.constant 0 : i32
    %c0_i32_1 = arith.constant 0 : i32
    return %c0_i32, %c0_i32_0 : i32, i32
  }
  func.func @transform_4(%arg0: i32, %arg1: i32, %arg2: i32) -> (i32, i32) {
    %c0_i32 = arith.constant 0 : i32
    %c0_i32_0 = arith.constant 0 : i32
    %c0_i32_1 = arith.constant 0 : i32
    return %c0_i32, %c0_i32_0 : i32, i32
  }
  func.func @transform_5(%arg0: i32, %arg1: i32, %arg2: i32) -> (i32, i32, i32) {
    %c1_i32 = arith.constant 1 : i32
    %0 = arith.muli %arg1, %c1_i32 : i32
    %1 = arith.addi %0, %arg2 : i32
    %c0_i32 = arith.constant 0 : i32
    %c0_i32_0 = arith.constant 0 : i32
    return %arg0, %1, %c0_i32 : i32, i32, i32
  }
  func.func @transform_6(%arg0: i32, %arg1: i32, %arg2: i32) -> (i32, i32, i32, i32) {
    %c0_i32 = arith.constant 0 : i32
    %c0_i32_0 = arith.constant 0 : i32
    %c0_i32_1 = arith.constant 0 : i32
    return %arg0, %arg1, %c0_i32, %c0_i32_0 : i32, i32, i32, i32
  }
}

</mosaic_0001>

<llo_original>
// kernel: tpu_custom_call.1
$region0: #{tpu_custom_call.1}
  #allocation0 [shape = 'u32[]', space=smem, size = 0x4, offset = 0x4, fixed_abs, tag = 'smem constant byte address 0x4 - core index']
  #allocation1 [shape = 'u32[72,128]{1,0:T(1,128)}', space=vmem, size = 0x9000, scoped, tag = 'internal scratch']
  %s0 = inlined_call_operand.vmem [shape: f32[2,256,64], index: 0, kind: input, shape index: {}]
  %s1 = inlined_call_operand.vmem [shape: f32[2,256,64], index: 1, kind: input, shape index: {}]
  %s2 = inlined_call_operand.vmem [shape: bf16[64,128], index: 2, kind: input, shape index: {}]
  %s3 = inlined_call_operand.vmem [shape: bf16[64,128], index: 3, kind: input, shape index: {}]
  %s4 = inlined_call_operand.vmem [shape: f32[1,128], index: 4, kind: input, shape index: {}]
  %s5 = inlined_call_operand.hbm [shape: bf16[2,256,128], index: 5, kind: output, shape index: {0}]
  %s6 = inlined_call_operand.hbm [shape: f32[2,1,1,128], index: 6, kind: output, shape index: {1}]
  %7 = xla_tuple %s5, %s6
  %s8 = sld [smem:[#allocation0]]
  $region65: #{tpu_custom_call.1} parent=0
    _
  %s10 = ssub.s32 1, %s8
  %s11 = scalar_select 0, %s10, %s8
  $region1: #{tpu_custom_call.1} parent=0
    #allocation2 [shape = 'u8[131072]{0}', space=vmem, size = 0x20000, scoped, tag = 'output window, operand 0']
    #allocation3 [shape = 's32[2]{0}', space=sflag, size = 0x8, scoped, tag = 'scoped memory for tpu_custom_call.1']
    #allocation4 [shape = 'u8[1024]{0}', space=vmem, size = 0x400, scoped, tag = 'output window, operand 1']
    #allocation5 [shape = 's32[2]{0}', space=sflag, size = 0x8, scoped, tag = 'scoped memory for tpu_custom_call.1']
    %12 = vsyncpa [#allocation3], 0
    %s13 = scalar_lea.sflag [#allocation3], 1
    %14 = vsyncpa %s13, 0
    %15 = vsyncpa [#allocation5], 0
    %s16 = scalar_lea.sflag [#allocation5], 1
    %17 = vsyncpa %s16, 0
    loop: start=0, step=1, limit=4
    $region2: #{tpu_custom_call.1} parent=1 // loop_pre_header
      _
    $region3: #{tpu_custom_call.1} parent=1 // loop_header
      %s19 = sphi 0, %s23
      %p20 = scmp.ge.s32.totalorder %s19, 4
      %s26 = sphi 0, %s45
      %s27 = sphi 0, %s41
      %s28 = sphi 0, %s37
      %s29 = sphi 0, %s26
      %s30 = sphi 0, %s27
      %s31 = sphi 0, %s28
      %s32 = sphi 0, %s29
      %s33 = sphi 0, %s30
      %s34 = sphi 0, %s31
      %s52 = sphi 0, %s54
      %s55 = sphi 0, %s52
      %s56 = sphi 0, %s55
      %s72 = sphi 0, %s56
      %s82 = sphi 0, %s84
      %s85 = sphi 0, %s82
      %s86 = sphi 0, %s85
      %s102 = sphi 0, %s86
      %s106 = sphi 0, %s106
      %s108 = sphi 0, %s106
      %s109 = sphi 0, %s108
      %s123 = sphi 0, %s109
      %s127 = sphi 0, %s127
      %s129 = sphi 0, %s127
      %s130 = sphi 0, %s129
      %s144 = sphi 0, %s130
      %s148 = sphi 0, %s148
      %s150 = sphi 0, %s148
      %s151 = sphi 0, %s150
      %s165 = sphi 0, %s151
      %s175 = sphi 0, %s177
      %s178 = sphi 0, %s175
      %s179 = sphi 0, %s178
      %s195 = sphi 0, %s179
      %s203 = sphi 0, %s205
      %s206 = sphi 0, %s203
      %s207 = sphi 0, %s206
      %s223 = sphi 0, %s207
    $region4: #{tpu_custom_call.1} parent=1 // loop_header_branch
      %22 = sbr.rel (%p20) target = $region8
    $region5: #{tpu_custom_call.1} parent=1 // loop_body
      %s24 = ssub.s32 %s19, 1
      %s25 = ssub.s32 %s19, 2
      %s35 = sadd.s32 1, %s28
      %p36 = scmp.ge.s32.totalorder %s35, 1
      %s37 = scalar_select %p36, 0, %s35
      %s38 = sadd.s32 1, %s27
      %s39 = scalar_select %p36, %s38, %s27
      %p40 = scmp.ge.s32.totalorder %s39, 1
      %s41 = scalar_select %p40, 0, %s39
      %s42 = sadd.s32 1, %s26
      %s43 = scalar_select %p40, %s42, %s26
      %p44 = scmp.ge.s32.totalorder %s43, 2
      %s45 = scalar_select %p44, 0, %s43
      %s46 = sadd.s32 %s27, %s28
      %s47 = sadd.s32 %s41, %s37
      %s48 = ssub.s32 %s26, %s45
      %s49 = ssub.s32 %s46, %s47
      %s50 = sor.u32 %s48, %s49
      %p51 = scmp.eq.s32.totalorder %s50, 0
      %s53 = sadd.s32 %s52, 1
      %s54 = scalar_select %p51, %s52, %s53
      %p57 = pneg %p51
      %p58 = scmp.eq.s32.totalorder %s19, 1
      %p59 = por %p57, %p58
      %p60 = scmp.ne.s32.totalorder %s52, %s55
      %p61 = scmp.eq.s32.totalorder %s19, 0
      %p62 = por %p60, %p61
      %p63 = scmp.ne.s32.totalorder %s52, %s55
      %p64 = scmp.eq.s32.totalorder %s24, 1
      %p65 = por %p63, %p64
      %p66 = scmp.ne.s32.totalorder %s55, %s56
      %p67 = scmp.eq.s32.totalorder %s24, 0
      %p68 = por %p66, %p67
      %p69 = scmp.ne.s32.totalorder %s55, %s56
      %p70 = scmp.eq.s32.totalorder %s25, 1
      %p71 = por %p69, %p70
      %p73 = scmp.ne.s32.totalorder %s56, %s72
      %p74 = scmp.eq.s32.totalorder %s25, 0
      %p75 = por %p73, %p74
      %s76 = sadd.s32 %s27, %s28
      %s77 = sadd.s32 %s41, %s37
      %s78 = ssub.s32 %s26, %s45
      %s79 = ssub.s32 %s76, %s77
      %s80 = sor.u32 %s78, %s79
      %p81 = scmp.eq.s32.totalorder %s80, 0
      %s83 = sadd.s32 %s82, 1
      %s84 = scalar_select %p81, %s82, %s83
      %p87 = pneg %p81
      %p88 = scmp.eq.s32.totalorder %s19, 1
      %p89 = por %p87, %p88
      %p90 = scmp.ne.s32.totalorder %s82, %s85
      %p91 = scmp.eq.s32.totalorder %s19, 0
      %p92 = por %p90, %p91
      %p93 = scmp.ne.s32.totalorder %s82, %s85
      %p94 = scmp.eq.s32.totalorder %s24, 1
      %p95 = por %p93, %p94
      %p96 = scmp.ne.s32.totalorder %s85, %s86
      %p97 = scmp.eq.s32.totalorder %s24, 0
      %p98 = por %p96, %p97
      %p99 = scmp.ne.s32.totalorder %s85, %s86
      %p100 = scmp.eq.s32.totalorder %s25, 1
      %p101 = por %p99, %p100
      %p103 = scmp.ne.s32.totalorder %s86, %s102
      %p104 = scmp.eq.s32.totalorder %s25, 0
      %p105 = por %p103, %p104
      %s107 = sadd.s32 %s106, 1
      %p110 = scmp.eq.s32.totalorder %s19, 1
      %p111 = scmp.ne.s32.totalorder %s106, %s108
      %p112 = scmp.eq.s32.totalorder %s19, 0
      %p113 = por %p111, %p112
      %p114 = scmp.ne.s32.totalorder %s106, %s108
      %p115 = scmp.eq.s32.totalorder %s24, 1
      %p116 = por %p114, %p115
      %p117 = scmp.ne.s32.totalorder %s108, %s109
      %p118 = scmp.eq.s32.totalorder %s24, 0
      %p119 = por %p117, %p118
      %p120 = scmp.ne.s32.totalorder %s108, %s109
      %p121 = scmp.eq.s32.totalorder %s25, 1
      %p122 = por %p120, %p121
      %p124 = scmp.ne.s32.totalorder %s109, %s123
      %p125 = scmp.eq.s32.totalorder %s25, 0
      %p126 = por %p124, %p125
      %s128 = sadd.s32 %s127, 1
      %p131 = scmp.eq.s32.totalorder %s19, 1
      %p132 = scmp.ne.s32.totalorder %s127, %s129
      %p133 = scmp.eq.s32.totalorder %s19, 0
      %p134 = por %p132, %p133
      %p135 = scmp.ne.s32.totalorder %s127, %s129
      %p136 = scmp.eq.s32.totalorder %s24, 1
      %p137 = por %p135, %p136
      %p138 = scmp.ne.s32.totalorder %s129, %s130
      %p139 = scmp.eq.s32.totalorder %s24, 0
      %p140 = por %p138, %p139
      %p141 = scmp.ne.s32.totalorder %s129, %s130
      %p142 = scmp.eq.s32.totalorder %s25, 1
      %p143 = por %p141, %p142
      %p145 = scmp.ne.s32.totalorder %s130, %s144
      %p146 = scmp.eq.s32.totalorder %s25, 0
      %p147 = por %p145, %p146
      %s149 = sadd.s32 %s148, 1
      %p152 = scmp.eq.s32.totalorder %s19, 1
      %p153 = scmp.ne.s32.totalorder %s148, %s150
      %p154 = scmp.eq.s32.totalorder %s19, 0
      %p155 = por %p153, %p154
      %p156 = scmp.ne.s32.totalorder %s148, %s150
      %p157 = scmp.eq.s32.totalorder %s24, 1
      %p158 = por %p156, %p157
      %p159 = scmp.ne.s32.totalorder %s150, %s151
      %p160 = scmp.eq.s32.totalorder %s24, 0
      %p161 = por %p159, %p160
      %p162 = scmp.ne.s32.totalorder %s150, %s151
      %p163 = scmp.eq.s32.totalorder %s25, 1
      %p164 = por %p162, %p163
      %p166 = scmp.ne.s32.totalorder %s151, %s165
      %p167 = scmp.eq.s32.totalorder %s25, 0
      %p168 = por %p166, %p167
      %s169 = sadd.s32 %s27, %s28
      %s170 = sadd.s32 %s41, %s37
      %s171 = ssub.s32 %s26, %s45
      %s172 = ssub.s32 %s169, %s170
      %s173 = sor.u32 %s171, %s172
      %p174 = scmp.eq.s32.totalorder %s173, 0
      %s176 = sadd.s32 %s175, 1
      %s177 = scalar_select %p174, %s175, %s176
      %p180 = pneg %p174
      %p181 = scmp.eq.s32.totalorder %s19, 1
      %p182 = por %p180, %p181
      %p183 = scmp.ne.s32.totalorder %s175, %s178
      %p184 = scmp.eq.s32.totalorder %s19, 0
      %p185 = por %p183, %p184
      %p186 = scmp.ne.s32.totalorder %s175, %s178
      %p187 = scmp.eq.s32.totalorder %s24, 1
      %p188 = por %p186, %p187
      %p189 = scmp.ne.s32.totalorder %s178, %s179
      %p190 = scmp.eq.s32.totalorder %s24, 0
      %p191 = por %p189, %p190
      %p192 = scmp.ne.s32.totalorder %s178, %s179
      %p193 = scmp.eq.s32.totalorder %s25, 1
      %p194 = por %p192, %p193
      %p196 = scmp.ne.s32.totalorder %s179, %s195
      %p197 = scmp.eq.s32.totalorder %s25, 0
      %p198 = por %p196, %p197
      %s199 = ssub.s32 %s26, %s45
      %s200 = ssub.s32 %s27, %s41
      %s201 = sor.u32 %s199, %s200
      %p202 = scmp.eq.s32.totalorder %s201, 0
      %s204 = sadd.s32 %s203, 1
      %s205 = scalar_select %p202, %s203, %s204
      %p208 = pneg %p202
      %p209 = scmp.eq.s32.totalorder %s19, 1
      %p210 = por %p208, %p209
      %p211 = scmp.ne.s32.totalorder %s203, %s206
      %p212 = scmp.eq.s32.totalorder %s19, 0
      %p213 = por %p211, %p212
      %p214 = scmp.ne.s32.totalorder %s203, %s206
      %p215 = scmp.eq.s32.totalorder %s24, 1
      %p216 = por %p214, %p215
      %p217 = scmp.ne.s32.totalorder %s206, %s207
      %p218 = scmp.eq.s32.totalorder %s24, 0
      %p219 = por %p217, %p218
      %p220 = scmp.ne.s32.totalorder %s206, %s207
      %p221 = scmp.eq.s32.totalorder %s25, 1
      %p222 = por %p220, %p221
      %p224 = scmp.ne.s32.totalorder %s207, %s223
      %p225 = scmp.eq.s32.totalorder %s25, 0
      %p226 = por %p224, %p225
      %p227 = scmp.le.s32.totalorder 1, %s19
      %p228 = scmp.lt.s32.totalorder %s19, 3
      %p229 = pnand %p227, %p228
      %p230 = pneg %p229
      // Predicated region
      $region9: #{tpu_custom_call.1} parent=5 // pred_check
        _
      $region10: #{tpu_custom_call.1} parent=5 // pred_check_branch
        %232 = sbr.rel (%p229) target = $region12
      $region11: #{tpu_custom_call.1} parent=5 // pred_region
        %s233 = ssub.s32 %s19, 1
        // Predicated region
        $region13: #{tpu_custom_call.1} parent=11 // pred_check
          %p234 = pneg %p119
        $region14: #{tpu_custom_call.1} parent=11 // pred_check_branch
          %236 = sbr.rel (%p234) target = $region16
        $region15: #{tpu_custom_call.1} parent=11 // pred_region
          _
        $region16: #{tpu_custom_call.1} parent=11 // pred_fallthru
          _
        // Predicated region
        $region17: #{tpu_custom_call.1} parent=11 // pred_check
          %p237 = pneg %p140
        $region18: #{tpu_custom_call.1} parent=11 // pred_check_branch
          %239 = sbr.rel (%p237) target = $region20
        $region19: #{tpu_custom_call.1} parent=11 // pred_region
          _
        $region20: #{tpu_custom_call.1} parent=11 // pred_fallthru
          _
        // Predicated region
        $region21: #{tpu_custom_call.1} parent=11 // pred_check
          %p240 = pneg %p161
        $region22: #{tpu_custom_call.1} parent=11 // pred_check_branch
          %242 = sbr.rel (%p240) target = $region24
        $region23: #{tpu_custom_call.1} parent=11 // pred_region
          _
        $region24: #{tpu_custom_call.1} parent=11 // pred_fallthru
          _
      $region12: #{tpu_custom_call.1} parent=5 // pred_fallthru
        _
      %p243 = scmp.lt.s32.totalorder %s19, 2
      // Predicated region
      $region25: #{tpu_custom_call.1} parent=5 // pred_check
        %p244 = pneg %p243
      $region26: #{tpu_custom_call.1} parent=5 // pred_check_branch
        %246 = sbr.rel (%p244) target = $region28
      $region27: #{tpu_custom_call.1} parent=5 // pred_region
        // Predicated region
        $region29: #{tpu_custom_call.1} parent=27 // pred_check
          %p247 = pneg %p62
        $region30: #{tpu_custom_call.1} parent=27 // pred_check_branch
          %249 = sbr.rel (%p247) target = $region32
        $region31: #{tpu_custom_call.1} parent=27 // pred_region
          %s250 = sadd.s32 %s27, %s28
          %s251 = smul.u32 32, %s250
          %p252 = scmp.lt.s32.totalorder %s26, 1
          %s253 = scalar_select %p252, %s26, 1
          %p254 = scmp.lt.s32.totalorder %s251, 31
          %s255 = scalar_select %p254, %s251, 31
          %s256 = smul.addr %s253, 32
          %s257 = sadd.s32 %s255, %s256
          %s258 = smul.addr %s257, 8
          %s259 = scalar_lea.vmem %s0, %s258
          %s260 = sadd.s32 %s27, %s28
          %s261 = smul.u32 32, %s260
        $region32: #{tpu_custom_call.1} parent=27 // pred_fallthru
          _
        // Predicated region
        $region33: #{tpu_custom_call.1} parent=27 // pred_check
          %p262 = pneg %p92
        $region34: #{tpu_custom_call.1} parent=27 // pred_check_branch
          %264 = sbr.rel (%p262) target = $region36
        $region35: #{tpu_custom_call.1} parent=27 // pred_region
          %s265 = sadd.s32 %s27, %s28
          %s266 = smul.u32 32, %s265
          %p267 = scmp.lt.s32.totalorder %s26, 1
          %s268 = scalar_select %p267, %s26, 1
          %p269 = scmp.lt.s32.totalorder %s266, 31
          %s270 = scalar_select %p269, %s266, 31
          %s271 = smul.addr %s268, 32
          %s272 = sadd.s32 %s270, %s271
          %s273 = smul.addr %s272, 8
          %s274 = scalar_lea.vmem %s1, %s273
          %s275 = sadd.s32 %s27, %s28
          %s276 = smul.u32 32, %s275
        $region36: #{tpu_custom_call.1} parent=27 // pred_fallthru
          _
      $region28: #{tpu_custom_call.1} parent=5 // pred_fallthru
        _
      %p277 = scmp.le.s32.totalorder 1, %s19
      %p278 = scmp.lt.s32.totalorder %s19, 3
      %p279 = pnand %p277, %p278
      %p280 = pneg %p279
      // Predicated region
      $region37: #{tpu_custom_call.1} parent=5 // pred_check
        _
      $region38: #{tpu_custom_call.1} parent=5 // pred_check_branch
        %282 = sbr.rel (%p279) target = $region40
      $region39: #{tpu_custom_call.1} parent=5 // pred_region
        %s283 = ssub.s32 %s19, 1
        %s284 = sadd.s32 %s30, %s31
        %s285 = smul.u32 32, %s284
        %p286 = scmp.lt.s32.totalorder %s29, 1
        %s287 = scalar_select %p286, %s29, 1
        %p288 = scmp.lt.s32.totalorder %s285, 31
        %s289 = scalar_select %p288, %s285, 31
        %s290 = smul.addr %s287, 32
        %s291 = sadd.s32 %s289, %s290
        %s292 = smul.addr %s291, 8
        %s293 = scalar_lea.vmem %s0, %s292
        %p294 = pneg %p68
        %p295 = pneg %p65
        %s296 = sadd.s32 %s30, %s31
        %s297 = smul.u32 32, %s296
        %p298 = scmp.lt.s32.totalorder %s29, 1
        %s299 = scalar_select %p298, %s29, 1
        %p300 = scmp.lt.s32.totalorder %s297, 31
        %s301 = scalar_select %p300, %s297, 31
        %s302 = smul.addr %s299, 32
        %s303 = sadd.s32 %s301, %s302
        %s304 = smul.addr %s303, 8
        %s305 = scalar_lea.vmem %s1, %s304
        %p306 = pneg %p98
        %p307 = pneg %p95
        %p308 = pneg %p119
        %p309 = pneg %p116
        %p310 = pneg %p140
        %p311 = pneg %p137
        %p312 = pneg %p161
        %p313 = pneg %p158
        %p314 = pneg %p191
        %p315 = pneg %p188
        %s316 = sand.u32 %s178, 1
        %s317 = scalar_lea.sflag [#allocation3], %s316
        %s318 = sand.u32 %s178, 1
        %s319 = smul.addr %s318, 128
        %s320 = scalar_lea.vmem [#allocation2], %s319
        %p321 = pneg %p219
        %p322 = pneg %p216
        %s323 = sand.u32 %s206, 1
        %s324 = scalar_lea.sflag [#allocation5], %s323
        %s325 = sand.u32 %s206, 1
        %s326 = scalar_lea.vmem [#allocation4], %s325
        %s327 = sadd.s32 %s30, %s31
        %s328 = smul.u32 32, %s327
        %p329 = scmp.lt.s32.totalorder %s29, 1
        %s330 = scalar_select %p329, %s29, 1
        %p331 = scmp.lt.s32.totalorder %s328, 31
        %s332 = scalar_select %p331, %s328, 31
        %s333 = smul.addr %s330, 32
        %s334 = sadd.s32 %s332, %s333
        %s335 = smul.addr %s334, 8
        %s336 = scalar_lea.vmem %s0, %s335
        %s337 = sadd.s32 %s30, %s31
        %s338 = smul.u32 32, %s337
        %s339 = sadd.s32 %s30, %s31
        %s340 = smul.u32 32, %s339
        %p341 = scmp.lt.s32.totalorder %s29, 1
        %s342 = scalar_select %p341, %s29, 1
        %p343 = scmp.lt.s32.totalorder %s340, 31
        %s344 = scalar_select %p343, %s340, 31
        %s345 = smul.addr %s342, 32
        %s346 = sadd.s32 %s344, %s345
        %s347 = smul.addr %s346, 8
        %s348 = scalar_lea.vmem %s1, %s347
        %s349 = sadd.s32 %s30, %s31
        %s350 = smul.u32 32, %s349
        %s351 = sadd.s32 %s30, %s31
        %s352 = smul.u32 32, %s351
        %v354 = vld [vmem:[%s336] sm:$0xff]
        %v355 = vld [vmem:[%s336 + $0x8] sm:$0xff]
        %v356 = vld [vmem:[%s336 + $0x10] sm:$0xff]
        %v357 = vld [vmem:[%s336 + $0x18] sm:$0xff]
        %v358 = vld [vmem:[%s336 + $0x20] sm:$0xff]
        %v359 = vld [vmem:[%s336 + $0x28] sm:$0xff]
        %v360 = vld [vmem:[%s336 + $0x30] sm:$0xff]
        %v361 = vld [vmem:[%s336 + $0x38] sm:$0xff]
        %v362 = vld [vmem:[%s336 + $0x40] sm:$0xff]
        %v363 = vld [vmem:[%s336 + $0x48] sm:$0xff]
        %v364 = vld [vmem:[%s336 + $0x50] sm:$0xff]
        %v365 = vld [vmem:[%s336 + $0x58] sm:$0xff]
        %v366 = vld [vmem:[%s336 + $0x60] sm:$0xff]
        %v367 = vld [vmem:[%s336 + $0x68] sm:$0xff]
        %v368 = vld [vmem:[%s336 + $0x70] sm:$0xff]
        %v369 = vld [vmem:[%s336 + $0x78] sm:$0xff]
        %v370 = vld [vmem:[%s336 + $0x80] sm:$0xff]
        %v371 = vld [vmem:[%s336 + $0x88] sm:$0xff]
        %v372 = vld [vmem:[%s336 + $0x90] sm:$0xff]
        %v373 = vld [vmem:[%s336 + $0x98] sm:$0xff]
        %v374 = vld [vmem:[%s336 + $0xa0] sm:$0xff]
        %v375 = vld [vmem:[%s336 + $0xa8] sm:$0xff]
        %v376 = vld [vmem:[%s336 + $0xb0] sm:$0xff]
        %v377 = vld [vmem:[%s336 + $0xb8] sm:$0xff]
        %v378 = vld [vmem:[%s336 + $0xc0] sm:$0xff]
        %v379 = vld [vmem:[%s336 + $0xc8] sm:$0xff]
        %v380 = vld [vmem:[%s336 + $0xd0] sm:$0xff]
        %v381 = vld [vmem:[%s336 + $0xd8] sm:$0xff]
        %v382 = vld [vmem:[%s336 + $0xe0] sm:$0xff]
        %v383 = vld [vmem:[%s336 + $0xe8] sm:$0xff]
        %v384 = vld [vmem:[%s336 + $0xf0] sm:$0xff]
        %v385 = vld [vmem:[%s336 + $0xf8] sm:$0xff]
        %v386 = vpack.c.bf16 %v355, %v354
        %v387 = vpack.c.bf16 %v357, %v356
        %v388 = vpack.c.bf16 %v359, %v358
        %v389 = vpack.c.bf16 %v361, %v360
        %v390 = vpack.c.bf16 %v363, %v362
        %v391 = vpack.c.bf16 %v365, %v364
        %v392 = vpack.c.bf16 %v367, %v366
        %v393 = vpack.c.bf16 %v369, %v368
        %v394 = vpack.c.bf16 %v371, %v370
        %v395 = vpack.c.bf16 %v373, %v372
        %v396 = vpack.c.bf16 %v375, %v374
        %v397 = vpack.c.bf16 %v377, %v376
        %v398 = vpack.c.bf16 %v379, %v378
        %v399 = vpack.c.bf16 %v381, %v380
        %v400 = vpack.c.bf16 %v383, %v382
        %v401 = vpack.c.bf16 %v385, %v384
        %v402 = vld [vmem:[%s348] sm:$0xff]
        %v403 = vld [vmem:[%s348 + $0x8] sm:$0xff]
        %v404 = vld [vmem:[%s348 + $0x10] sm:$0xff]
        %v405 = vld [vmem:[%s348 + $0x18] sm:$0xff]
        %v406 = vld [vmem:[%s348 + $0x20] sm:$0xff]
        %v407 = vld [vmem:[%s348 + $0x28] sm:$0xff]
        %v408 = vld [vmem:[%s348 + $0x30] sm:$0xff]
        %v409 = vld [vmem:[%s348 + $0x38] sm:$0xff]
        %v410 = vld [vmem:[%s348 + $0x40] sm:$0xff]
        %v411 = vld [vmem:[%s348 + $0x48] sm:$0xff]
        %v412 = vld [vmem:[%s348 + $0x50] sm:$0xff]
        %v413 = vld [vmem:[%s348 + $0x58] sm:$0xff]
        %v414 = vld [vmem:[%s348 + $0x60] sm:$0xff]
        %v415 = vld [vmem:[%s348 + $0x68] sm:$0xff]
        %v416 = vld [vmem:[%s348 + $0x70] sm:$0xff]
        %v417 = vld [vmem:[%s348 + $0x78] sm:$0xff]
        %v418 = vld [vmem:[%s348 + $0x80] sm:$0xff]
        %v419 = vld [vmem:[%s348 + $0x88] sm:$0xff]
        %v420 = vld [vmem:[%s348 + $0x90] sm:$0xff]
        %v421 = vld [vmem:[%s348 + $0x98] sm:$0xff]
        %v422 = vld [vmem:[%s348 + $0xa0] sm:$0xff]
        %v423 = vld [vmem:[%s348 + $0xa8] sm:$0xff]
        %v424 = vld [vmem:[%s348 + $0xb0] sm:$0xff]
        %v425 = vld [vmem:[%s348 + $0xb8] sm:$0xff]
        %v426 = vld [vmem:[%s348 + $0xc0] sm:$0xff]
        %v427 = vld [vmem:[%s348 + $0xc8] sm:$0xff]
        %v428 = vld [vmem:[%s348 + $0xd0] sm:$0xff]
        %v429 = vld [vmem:[%s348 + $0xd8] sm:$0xff]
        %v430 = vld [vmem:[%s348 + $0xe0] sm:$0xff]
        %v431 = vld [vmem:[%s348 + $0xe8] sm:$0xff]
        %v432 = vld [vmem:[%s348 + $0xf0] sm:$0xff]
        %v433 = vld [vmem:[%s348 + $0xf8] sm:$0xff]
        %v434 = vpack.c.bf16 %v403, %v402
        %v435 = vpack.c.bf16 %v405, %v404
        %v436 = vpack.c.bf16 %v407, %v406
        %v437 = vpack.c.bf16 %v409, %v408
        %v438 = vpack.c.bf16 %v411, %v410
        %v439 = vpack.c.bf16 %v413, %v412
        %v440 = vpack.c.bf16 %v415, %v414
        %v441 = vpack.c.bf16 %v417, %v416
        %v442 = vpack.c.bf16 %v419, %v418
        %v443 = vpack.c.bf16 %v421, %v420
        %v444 = vpack.c.bf16 %v423, %v422
        %v445 = vpack.c.bf16 %v425, %v424
        %v446 = vpack.c.bf16 %v427, %v426
        %v447 = vpack.c.bf16 %v429, %v428
        %v448 = vpack.c.bf16 %v431, %v430
        %v449 = vpack.c.bf16 %v433, %v432
        %v450 = vld [vmem:[%s2] sm:$0xf]
        %v451 = vld [vmem:[%s2 + $0x4] sm:$0xf]
        %v452 = vld [vmem:[%s2 + $0x8] sm:$0xf]
        %v453 = vld [vmem:[%s2 + $0xc] sm:$0xf]
        %v454 = vld [vmem:[%s2 + $0x10] sm:$0xf]
        %v455 = vld [vmem:[%s2 + $0x14] sm:$0xf]
        %v456 = vld [vmem:[%s2 + $0x18] sm:$0xf]
        %v457 = vld [vmem:[%s2 + $0x1c] sm:$0xf]
        %v458 = vld [vmem:[%s3] sm:$0xf]
        %v459 = vld [vmem:[%s3 + $0x4] sm:$0xf]
        %v460 = vld [vmem:[%s3 + $0x8] sm:$0xf]
        %v461 = vld [vmem:[%s3 + $0xc] sm:$0xf]
        %v462 = vld [vmem:[%s3 + $0x10] sm:$0xf]
        %v463 = vld [vmem:[%s3 + $0x14] sm:$0xf]
        %v464 = vld [vmem:[%s3 + $0x18] sm:$0xf]
        %v465 = vld [vmem:[%s3 + $0x1c] sm:$0xf]
        %v474 = vunpack.c.l.b16 %v458
        %v475 = vunpack.c.l.b16 %v459
        %v476 = vunpack.c.l.b16 %v460
        %v477 = vunpack.c.l.b16 %v461
        %v478 = vunpack.c.l.b16 %v462
        %v479 = vunpack.c.l.b16 %v463
        %v480 = vunpack.c.l.b16 %v464
        %v481 = vunpack.c.l.b16 %v465
        %v482 = vpack.c.b16 %v475, %v474
        %v483 = vpack.c.b16 %v477, %v476
        %v484 = vpack.c.b16 %v479, %v478
        %v485 = vpack.c.b16 %v481, %v480
        %vm490 = vcmask 523264
        %v492 = vsel %vm490, %v434, 0
        %v495 = vsel %vm490, %v435, 0
        %v498 = vsel %vm490, %v436, 0
        %v501 = vsel %vm490, %v437, 0
        %v504 = vsel %vm490, %v438, 0
        %v507 = vsel %vm490, %v439, 0
        %v510 = vsel %vm490, %v440, 0
        %v513 = vsel %vm490, %v441, 0
        %v516 = vsel %vm490, %v442, 0
        %v519 = vsel %vm490, %v443, 0
        %v522 = vsel %vm490, %v444, 0
        %v525 = vsel %vm490, %v445, 0
        %v528 = vsel %vm490, %v446, 0
        %v531 = vsel %vm490, %v447, 0
        %v534 = vsel %vm490, %v448, 0
        %v537 = vsel %vm490, %v449, 0
        %539 = vmatpush.bf16.msra.mxu0 0
        %540 = vmatpush.bf16.msra.mxu0 0
        %541 = vmatpush.bf16.msra.mxu0 0
        %542 = vmatpush.bf16.msra.mxu0 0
        %543 = vmatpush.bf16.msra.mxu0 %v485
        %544 = vmatpush.bf16.msra.mxu0 %v484
        %545 = vmatpush.bf16.msra.mxu0 %v483
        %546 = vmatpush.bf16.msra.mxu0 %v482
        %547 = vmatmul.bf16.gmra.mxu0 %v492
        %v548 = vpop.f32.mrf.mxu0
        %v549 = vadd.f32 0.0, %v548
        %v550 = vpop.f32.mrf.mxu0
        %v551 = vadd.f32 0.0, %v550
        %552 = vmatmul.bf16.gmra.mxu0 %v495
        %v553 = vpop.f32.mrf.mxu0
        %v554 = vadd.f32 0.0, %v553
        %v555 = vpop.f32.mrf.mxu0
        %v556 = vadd.f32 0.0, %v555
        %557 = vmatmul.bf16.gmra.mxu0 %v498
        %v558 = vpop.f32.mrf.mxu0
        %v559 = vadd.f32 0.0, %v558
        %v560 = vpop.f32.mrf.mxu0
        %v561 = vadd.f32 0.0, %v560
        %562 = vmatmul.bf16.gmra.mxu0 %v501
        %v563 = vpop.f32.mrf.mxu0
        %v564 = vadd.f32 0.0, %v563
        %v565 = vpop.f32.mrf.mxu0
        %v566 = vadd.f32 0.0, %v565
        %567 = vmatmul.bf16.gmra.mxu0 %v504
        %v568 = vpop.f32.mrf.mxu0
        %v569 = vadd.f32 0.0, %v568
        %v570 = vpop.f32.mrf.mxu0
        %v571 = vadd.f32 0.0, %v570
        %572 = vmatmul.bf16.gmra.mxu0 %v507
        %v573 = vpop.f32.mrf.mxu0
        %v574 = vadd.f32 0.0, %v573
        %v575 = vpop.f32.mrf.mxu0
        %v576 = vadd.f32 0.0, %v575
        %577 = vmatmul.bf16.gmra.mxu0 %v510
        %v578 = vpop.f32.mrf.mxu0
        %v579 = vadd.f32 0.0, %v578
        %v580 = vpop.f32.mrf.mxu0
        %v581 = vadd.f32 0.0, %v580
        %582 = vmatmul.bf16.gmra.mxu0 %v513
        %v583 = vpop.f32.mrf.mxu0
        %v584 = vadd.f32 0.0, %v583
        %v585 = vpop.f32.mrf.mxu0
        %v586 = vadd.f32 0.0, %v585
        %587 = vmatmul.bf16.gmra.mxu0 %v516
        %v588 = vpop.f32.mrf.mxu0
        %v589 = vadd.f32 0.0, %v588
        %v590 = vpop.f32.mrf.mxu0
        %v591 = vadd.f32 0.0, %v590
        %592 = vmatmul.bf16.gmra.mxu0 %v519
        %v593 = vpop.f32.mrf.mxu0
        %v594 = vadd.f32 0.0, %v593
        %v595 = vpop.f32.mrf.mxu0
        %v596 = vadd.f32 0.0, %v595
        %597 = vmatmul.bf16.gmra.mxu0 %v522
        %v598 = vpop.f32.mrf.mxu0
        %v599 = vadd.f32 0.0, %v598
        %v600 = vpop.f32.mrf.mxu0
        %v601 = vadd.f32 0.0, %v600
        %602 = vmatmul.bf16.gmra.mxu0 %v525
        %v603 = vpop.f32.mrf.mxu0
        %v604 = vadd.f32 0.0, %v603
        %v605 = vpop.f32.mrf.mxu0
        %v606 = vadd.f32 0.0, %v605
        %607 = vmatmul.bf16.gmra.mxu0 %v528
        %v608 = vpop.f32.mrf.mxu0
        %v609 = vadd.f32 0.0, %v608
        %v610 = vpop.f32.mrf.mxu0
        %v611 = vadd.f32 0.0, %v610
        %612 = vmatmul.bf16.gmra.mxu0 %v531
        %v613 = vpop.f32.mrf.mxu0
        %v614 = vadd.f32 0.0, %v613
        %v615 = vpop.f32.mrf.mxu0
        %v616 = vadd.f32 0.0, %v615
        %617 = vmatmul.bf16.gmra.mxu0 %v534
        %v618 = vpop.f32.mrf.mxu0
        %v619 = vadd.f32 0.0, %v618
        %v620 = vpop.f32.mrf.mxu0
        %v621 = vadd.f32 0.0, %v620
        %622 = vmatmul.bf16.gmra.mxu0 %v537
        %v623 = vpop.f32.mrf.mxu0
        %v624 = vadd.f32 0.0, %v623
        %v625 = vpop.f32.mrf.mxu0
        %v626 = vadd.f32 0.0, %v625
        %627 = vdwg.mxu0
        %v636 = vunpack.c.l.b16 %v450
        %v637 = vunpack.c.l.b16 %v451
        %v638 = vunpack.c.l.b16 %v452
        %v639 = vunpack.c.l.b16 %v453
        %v640 = vunpack.c.l.b16 %v454
        %v641 = vunpack.c.l.b16 %v455
        %v642 = vunpack.c.l.b16 %v456
        %v643 = vunpack.c.l.b16 %v457
        %v644 = vpack.c.b16 %v637, %v636
        %v645 = vpack.c.b16 %v639, %v638
        %v646 = vpack.c.b16 %v641, %v640
        %v647 = vpack.c.b16 %v643, %v642
        %v653 = vsel %vm490, %v386, 0
        %v656 = vsel %vm490, %v387, 0
        %v659 = vsel %vm490, %v388, 0
        %v662 = vsel %vm490, %v389, 0
        %v665 = vsel %vm490, %v390, 0
        %v668 = vsel %vm490, %v391, 0
        %v671 = vsel %vm490, %v392, 0
        %v674 = vsel %vm490, %v393, 0
        %v677 = vsel %vm490, %v394, 0
        %v680 = vsel %vm490, %v395, 0
        %v683 = vsel %vm490, %v396, 0
        %v686 = vsel %vm490, %v397, 0
        %v689 = vsel %vm490, %v398, 0
        %v692 = vsel %vm490, %v399, 0
        %v695 = vsel %vm490, %v400, 0
        %v698 = vsel %vm490, %v401, 0
        %700 = vmatpush.bf16.msra.mxu0 0
        %701 = vmatpush.bf16.msra.mxu0 0
        %702 = vmatpush.bf16.msra.mxu0 0
        %703 = vmatpush.bf16.msra.mxu0 0
        %704 = vmatpush.bf16.msra.mxu0 %v647
        %705 = vmatpush.bf16.msra.mxu0 %v646
        %706 = vmatpush.bf16.msra.mxu0 %v645
        %707 = vmatpush.bf16.msra.mxu0 %v644
        %708 = vmatmul.bf16.gmra.mxu0 %v653
        %v709 = vpop.f32.mrf.mxu0
        %v710 = vadd.f32 %v549, %v709
        %v711 = vpop.f32.mrf.mxu0
        %v712 = vadd.f32 %v551, %v711
        %713 = vmatmul.bf16.gmra.mxu0 %v656
        %v714 = vpop.f32.mrf.mxu0
        %v715 = vadd.f32 %v554, %v714
        %v716 = vpop.f32.mrf.mxu0
        %v717 = vadd.f32 %v556, %v716
        %718 = vmatmul.bf16.gmra.mxu0 %v659
        %v719 = vpop.f32.mrf.mxu0
        %v720 = vadd.f32 %v559, %v719
        %v721 = vpop.f32.mrf.mxu0
        %v722 = vadd.f32 %v561, %v721
        %723 = vmatmul.bf16.gmra.mxu0 %v662
        %v724 = vpop.f32.mrf.mxu0
        %v725 = vadd.f32 %v564, %v724
        %v726 = vpop.f32.mrf.mxu0
        %v727 = vadd.f32 %v566, %v726
        %728 = vmatmul.bf16.gmra.mxu0 %v665
        %v729 = vpop.f32.mrf.mxu0
        %v730 = vadd.f32 %v569, %v729
        %v731 = vpop.f32.mrf.mxu0
        %v732 = vadd.f32 %v571, %v731
        %733 = vmatmul.bf16.gmra.mxu0 %v668
        %v734 = vpop.f32.mrf.mxu0
        %v735 = vadd.f32 %v574, %v734
        %v736 = vpop.f32.mrf.mxu0
        %v737 = vadd.f32 %v576, %v736
        %738 = vmatmul.bf16.gmra.mxu0 %v671
        %v739 = vpop.f32.mrf.mxu0
        %v740 = vadd.f32 %v579, %v739
        %v741 = vpop.f32.mrf.mxu0
        %v742 = vadd.f32 %v581, %v741
        %743 = vmatmul.bf16.gmra.mxu0 %v674
        %v744 = vpop.f32.mrf.mxu0
        %v745 = vadd.f32 %v584, %v744
        %v746 = vpop.f32.mrf.mxu0
        %v747 = vadd.f32 %v586, %v746
        %748 = vmatmul.bf16.gmra.mxu0 %v677
        %v749 = vpop.f32.mrf.mxu0
        %v750 = vadd.f32 %v589, %v749
        %v751 = vpop.f32.mrf.mxu0
        %v752 = vadd.f32 %v591, %v751
        %753 = vmatmul.bf16.gmra.mxu0 %v680
        %v754 = vpop.f32.mrf.mxu0
        %v755 = vadd.f32 %v594, %v754
        %v756 = vpop.f32.mrf.mxu0
        %v757 = vadd.f32 %v596, %v756
        %758 = vmatmul.bf16.gmra.mxu0 %v683
        %v759 = vpop.f32.mrf.mxu0
        %v760 = vadd.f32 %v599, %v759
        %v761 = vpop.f32.mrf.mxu0
        %v762 = vadd.f32 %v601, %v761
        %763 = vmatmul.bf16.gmra.mxu0 %v686
        %v764 = vpop.f32.mrf.mxu0
        %v765 = vadd.f32 %v604, %v764
        %v766 = vpop.f32.mrf.mxu0
        %v767 = vadd.f32 %v606, %v766
        %768 = vmatmul.bf16.gmra.mxu0 %v689
        %v769 = vpop.f32.mrf.mxu0
        %v770 = vadd.f32 %v609, %v769
        %v771 = vpop.f32.mrf.mxu0
        %v772 = vadd.f32 %v611, %v771
        %773 = vmatmul.bf16.gmra.mxu0 %v692
        %v774 = vpop.f32.mrf.mxu0
        %v775 = vadd.f32 %v614, %v774
        %v776 = vpop.f32.mrf.mxu0
        %v777 = vadd.f32 %v616, %v776
        %778 = vmatmul.bf16.gmra.mxu0 %v695
        %v779 = vpop.f32.mrf.mxu0
        %v780 = vadd.f32 %v619, %v779
        %v781 = vpop.f32.mrf.mxu0
        %v782 = vadd.f32 %v621, %v781
        %783 = vmatmul.bf16.gmra.mxu0 %v698
        %v784 = vpop.f32.mrf.mxu0
        %v785 = vadd.f32 %v624, %v784
        %v786 = vpop.f32.mrf.mxu0
        %v787 = vadd.f32 %v626, %v786
        %788 = vdwg.mxu0
        %v789 = vld [vmem:[%s4] sm:$0x1]
        %v791 = vperm.slane %v789, 0
        %v793 = vadd.f32 %v710, %v791
        %v794 = vadd.f32 %v712, %v791
        %v795 = vadd.f32 %v715, %v791
        %v796 = vadd.f32 %v717, %v791
        %v797 = vadd.f32 %v720, %v791
        %v798 = vadd.f32 %v722, %v791
        %v799 = vadd.f32 %v725, %v791
        %v800 = vadd.f32 %v727, %v791
        %v801 = vadd.f32 %v730, %v791
        %v802 = vadd.f32 %v732, %v791
        %v803 = vadd.f32 %v735, %v791
        %v804 = vadd.f32 %v737, %v791
        %v805 = vadd.f32 %v740, %v791
        %v806 = vadd.f32 %v742, %v791
        %v807 = vadd.f32 %v745, %v791
        %v808 = vadd.f32 %v747, %v791
        %v809 = vadd.f32 %v750, %v791
        %v810 = vadd.f32 %v752, %v791
        %v811 = vadd.f32 %v755, %v791
        %v812 = vadd.f32 %v757, %v791
        %v813 = vadd.f32 %v760, %v791
        %v814 = vadd.f32 %v762, %v791
        %v815 = vadd.f32 %v765, %v791
        %v816 = vadd.f32 %v767, %v791
        %v817 = vadd.f32 %v770, %v791
        %v818 = vadd.f32 %v772, %v791
        %v819 = vadd.f32 %v775, %v791
        %v820 = vadd.f32 %v777, %v791
        %v821 = vadd.f32 %v780, %v791
        %v822 = vadd.f32 %v782, %v791
        %v823 = vadd.f32 %v785, %v791
        %v824 = vadd.f32 %v787, %v791
        %v825 = vmax.f32 %v793, 0.0
        %v826 = vmax.f32 %v794, 0.0
        %v827 = vmax.f32 %v795, 0.0
        %v828 = vmax.f32 %v796, 0.0
        %v829 = vmax.f32 %v797, 0.0
        %v830 = vmax.f32 %v798, 0.0
        %v831 = vmax.f32 %v799, 0.0
        %v832 = vmax.f32 %v800, 0.0
        %v833 = vmax.f32 %v801, 0.0
        %v834 = vmax.f32 %v802, 0.0
        %v835 = vmax.f32 %v803, 0.0
        %v836 = vmax.f32 %v804, 0.0
        %v837 = vmax.f32 %v805, 0.0
        %v838 = vmax.f32 %v806, 0.0
        %v839 = vmax.f32 %v807, 0.0
        %v840 = vmax.f32 %v808, 0.0
        %v841 = vmax.f32 %v809, 0.0
        %v842 = vmax.f32 %v810, 0.0
        %v843 = vmax.f32 %v811, 0.0
        %v844 = vmax.f32 %v812, 0.0
        %v845 = vmax.f32 %v813, 0.0
        %v846 = vmax.f32 %v814, 0.0
        %v847 = vmax.f32 %v815, 0.0
        %v848 = vmax.f32 %v816, 0.0
        %v849 = vmax.f32 %v817, 0.0
        %v850 = vmax.f32 %v818, 0.0
        %v851 = vmax.f32 %v819, 0.0
        %v852 = vmax.f32 %v820, 0.0
        %v853 = vmax.f32 %v821, 0.0
        %v854 = vmax.f32 %v822, 0.0
        %v855 = vmax.f32 %v823, 0.0
        %v856 = vmax.f32 %v824, 0.0
        %v857 = vpack.c.bf16 %v825, %v825
        %v858 = vpack.c.bf16 %v826, %v826
        %v859 = vpack.c.bf16 %v827, %v827
        %v860 = vpack.c.bf16 %v828, %v828
        %v861 = vpack.c.bf16 %v829, %v829
        %v862 = vpack.c.bf16 %v830, %v830
        %v863 = vpack.c.bf16 %v831, %v831
        %v864 = vpack.c.bf16 %v832, %v832
        %v865 = vpack.c.bf16 %v833, %v833
        %v866 = vpack.c.bf16 %v834, %v834
        %v867 = vpack.c.bf16 %v835, %v835
        %v868 = vpack.c.bf16 %v836, %v836
        %v869 = vpack.c.bf16 %v837, %v837
        %v870 = vpack.c.bf16 %v838, %v838
        %v871 = vpack.c.bf16 %v839, %v839
        %v872 = vpack.c.bf16 %v840, %v840
        %v873 = vpack.c.bf16 %v841, %v841
        %v874 = vpack.c.bf16 %v842, %v842
        %v875 = vpack.c.bf16 %v843, %v843
        %v876 = vpack.c.bf16 %v844, %v844
        %v877 = vpack.c.bf16 %v845, %v845
        %v878 = vpack.c.bf16 %v846, %v846
        %v879 = vpack.c.bf16 %v847, %v847
        %v880 = vpack.c.bf16 %v848, %v848
        %v881 = vpack.c.bf16 %v849, %v849
        %v882 = vpack.c.bf16 %v850, %v850
        %v883 = vpack.c.bf16 %v851, %v851
        %v884 = vpack.c.bf16 %v852, %v852
        %v885 = vpack.c.bf16 %v853, %v853
        %v886 = vpack.c.bf16 %v854, %v854
        %v887 = vpack.c.bf16 %v855, %v855
        %v888 = vpack.c.bf16 %v856, %v856
        %889 = vst [vmem:[%s320] sm:$0xf] %v857
        %890 = vst [vmem:[%s320 + $0x4] sm:$0xf] %v858
        %891 = vst [vmem:[%s320 + $0x8] sm:$0xf] %v859
        %892 = vst [vmem:[%s320 + $0xc] sm:$0xf] %v860
        %893 = vst [vmem:[%s320 + $0x10] sm:$0xf] %v861
        %894 = vst [vmem:[%s320 + $0x14] sm:$0xf] %v862
        %895 = vst [vmem:[%s320 + $0x18] sm:$0xf] %v863
        %896 = vst [vmem:[%s320 + $0x1c] sm:$0xf] %v864
        %897 = vst [vmem:[%s320 + $0x20] sm:$0xf] %v865
        %898 = vst [vmem:[%s320 + $0x24] sm:$0xf] %v866
        %899 = vst [vmem:[%s320 + $0x28] sm:$0xf] %v867
        %900 = vst [vmem:[%s320 + $0x2c] sm:$0xf] %v868
        %901 = vst [vmem:[%s320 + $0x30] sm:$0xf] %v869
        %902 = vst [vmem:[%s320 + $0x34] sm:$0xf] %v870
        %903 = vst [vmem:[%s320 + $0x38] sm:$0xf] %v871
        %904 = vst [vmem:[%s320 + $0x3c] sm:$0xf] %v872
        %905 = vst [vmem:[%s320 + $0x40] sm:$0xf] %v873
        %906 = vst [vmem:[%s320 + $0x44] sm:$0xf] %v874
        %907 = vst [vmem:[%s320 + $0x48] sm:$0xf] %v875
        %908 = vst [vmem:[%s320 + $0x4c] sm:$0xf] %v876
        %909 = vst [vmem:[%s320 + $0x50] sm:$0xf] %v877
        %910 = vst [vmem:[%s320 + $0x54] sm:$0xf] %v878
        %911 = vst [vmem:[%s320 + $0x58] sm:$0xf] %v879
        %912 = vst [vmem:[%s320 + $0x5c] sm:$0xf] %v880
        %913 = vst [vmem:[%s320 + $0x60] sm:$0xf] %v881
        %914 = vst [vmem:[%s320 + $0x64] sm:$0xf] %v882
        %915 = vst [vmem:[%s320 + $0x68] sm:$0xf] %v883
        %916 = vst [vmem:[%s320 + $0x6c] sm:$0xf] %v884
        %917 = vst [vmem:[%s320 + $0x70] sm:$0xf] %v885
        %918 = vst [vmem:[%s320 + $0x74] sm:$0xf] %v886
        %919 = vst [vmem:[%s320 + $0x78] sm:$0xf] %v887
        %920 = vst [vmem:[%s320 + $0x7c] sm:$0xf] %v888
        %p921 = scmp.eq.s32.totalorder %s31, 0
        // Predicated region
        $region41: #{tpu_custom_call.1} parent=39 // pred_check
          %p922 = pneg %p921
        $region42: #{tpu_custom_call.1} parent=39 // pred_check_branch
          %924 = sbr.rel (%p922) target = $region44
        $region43: #{tpu_custom_call.1} parent=39 // pred_region
          %925 = vst [vmem:[%s326] sm:$0x1] 0.0
        $region44: #{tpu_custom_call.1} parent=39 // pred_fallthru
          _
        %v926 = vld [vmem:[%s326] sm:$0x1]
        %v927 = vadd.f32 %v825, %v826
        %v928 = vadd.f32 %v927, %v827
        %v929 = vadd.f32 %v928, %v828
        %v930 = vadd.f32 %v929, %v829
        %v931 = vadd.f32 %v930, %v830
        %v932 = vadd.f32 %v931, %v831
        %v933 = vadd.f32 %v932, %v832
        %v934 = vadd.f32 %v933, %v833
        %v935 = vadd.f32 %v934, %v834
        %v936 = vadd.f32 %v935, %v835
        %v937 = vadd.f32 %v936, %v836
        %v938 = vadd.f32 %v937, %v837
        %v939 = vadd.f32 %v938, %v838
        %v940 = vadd.f32 %v939, %v839
        %v941 = vadd.f32 %v940, %v840
        %v942 = vadd.f32 %v941, %v841
        %v943 = vadd.f32 %v942, %v842
        %v944 = vadd.f32 %v943, %v843
        %v945 = vadd.f32 %v944, %v844
        %v946 = vadd.f32 %v945, %v845
        %v947 = vadd.f32 %v946, %v846
        %v948 = vadd.f32 %v947, %v847
        %v949 = vadd.f32 %v948, %v848
        %v950 = vadd.f32 %v949, %v849
        %v951 = vadd.f32 %v950, %v850
        %v952 = vadd.f32 %v951, %v851
        %v953 = vadd.f32 %v952, %v852
        %v954 = vadd.f32 %v953, %v853
        %v955 = vadd.f32 %v954, %v854
        %v956 = vadd.f32 %v955, %v855
        %v957 = vadd.f32 %v956, %v856
        %v958 = vrot.slane %v957, 4
        %v959 = vadd.f32 %v957, %v958
        %v960 = vrot.slane %v959, 2
        %v961 = vadd.f32 %v959, %v960
        %v962 = vrot.slane %v961, 1
        %v963 = vadd.f32 %v961, %v962
        %v964 = vadd.f32 %v926, %v963
        %965 = vst [vmem:[%s326] sm:$0x1] %v964
        %s966 = sand.u32 %s178, 1
        %s967 = scalar_lea.sflag [#allocation3], %s966
        %s968 = sand.u32 %s178, 1
        %s969 = smul.addr %s968, 128
        %s970 = scalar_lea.vmem [#allocation2], %s969
        %s971 = sand.u32 %s206, 1
        %s972 = scalar_lea.sflag [#allocation5], %s971
        %s973 = sand.u32 %s206, 1
        %s974 = scalar_lea.vmem [#allocation4], %s973
        // Predicated region
        $region45: #{tpu_custom_call.1} parent=39 // pred_check
          %p975 = pneg %p188
        $region46: #{tpu_custom_call.1} parent=39 // pred_check_branch
          %977 = sbr.rel (%p975) target = $region48
        $region47: #{tpu_custom_call.1} parent=39 // pred_region
          %s978 = sadd.s32 %s30, %s31
          %s979 = smul.u32 32, %s978
          %981 = vsyncadd %s967, 0
          %s982 = smul.addr %s29, 32
          %s983 = sadd.s32 %s979, %s982
          %s984 = smul.addr %s983, 4
          %s985 = scalar_lea.hbm %s5, %s984
          %s986 = sshll.u32 %s970, 4
          %s987 = int_to_ptr.vmem [resolvable:$true] %s986
          %s988 = sshll.u32 %s985, 4
          %s989 = int_to_ptr.hbm [resolvable:$true] %s988
          %994 = dma.vmem_to_hbm [thread:$0]  %s987, 2048, %s989, %s967, 64, 64, 4
        $region48: #{tpu_custom_call.1} parent=39 // pred_fallthru
          _
        // Predicated region
        $region49: #{tpu_custom_call.1} parent=39 // pred_check
          %p995 = pneg %p216
        $region50: #{tpu_custom_call.1} parent=39 // pred_check_branch
          %997 = sbr.rel (%p995) target = $region52
        $region51: #{tpu_custom_call.1} parent=39 // pred_region
          %999 = vsyncadd %s972, 0
          %s1000 = sadd.s32 %s30, %s29
          %s1001 = scalar_lea.hbm %s6, %s1000
          %s1003 = sshll.u32 %s974, 4
          %s1004 = int_to_ptr.vmem [resolvable:$true] %s1003
          %s1005 = sshll.u32 %s1001, 4
          %s1006 = int_to_ptr.hbm [resolvable:$true] %s1005
          %1008 = dma.vmem_to_hbm [thread:$0]  %s1004, 16, %s1006, %s972
        $region52: #{tpu_custom_call.1} parent=39 // pred_fallthru
          _
      $region40: #{tpu_custom_call.1} parent=5 // pred_fallthru
        _
      %p1009 = scmp.le.s32.totalorder 2, %s19
      // Predicated region
      $region53: #{tpu_custom_call.1} parent=5 // pred_check
        %p1010 = pneg %p1009
      $region54: #{tpu_custom_call.1} parent=5 // pred_check_branch
        %1012 = sbr.rel (%p1010) target = $region56
      $region55: #{tpu_custom_call.1} parent=5 // pred_region
        %s1013 = ssub.s32 %s19, 2
        // Predicated region
        $region57: #{tpu_custom_call.1} parent=55 // pred_check
          %p1014 = pneg %p194
        $region58: #{tpu_custom_call.1} parent=55 // pred_check_branch
          %1016 = sbr.rel (%p1014) target = $region60
        $region59: #{tpu_custom_call.1} parent=55 // pred_region
          %s1017 = sand.u32 %s179, 1
          %s1018 = scalar_lea.sflag [#allocation3], %s1017
          %s1019 = sand.u32 %s179, 1
          %s1020 = smul.addr %s1019, 128
          %s1021 = scalar_lea.vmem [#allocation2], %s1020
          %1023 = dma.done %s1018, 2048
        $region60: #{tpu_custom_call.1} parent=55 // pred_fallthru
          _
        // Predicated region
        $region61: #{tpu_custom_call.1} parent=55 // pred_check
          %p1024 = pneg %p222
        $region62: #{tpu_custom_call.1} parent=55 // pred_check_branch
          %1026 = sbr.rel (%p1024) target = $region64
        $region63: #{tpu_custom_call.1} parent=55 // pred_region
          %s1027 = sand.u32 %s207, 1
          %s1028 = scalar_lea.sflag [#allocation5], %s1027
          %s1029 = sand.u32 %s207, 1
          %s1030 = scalar_lea.vmem [#allocation4], %s1029
          %1032 = dma.done %s1028, 16
        $region64: #{tpu_custom_call.1} parent=55 // pred_fallthru
          _
      $region56: #{tpu_custom_call.1} parent=5 // pred_fallthru
        _
    $region6: #{tpu_custom_call.1} parent=1 // loop_footer
      %s23 = sadd.s32 1, %s19
    $region7: #{tpu_custom_call.1} parent=1 // loop_footer_branch
      %18 = sbr.rel target = $region3
    $region8: #{tpu_custom_call.1} parent=1 // loop_exit
      _
    %1033 = vsyncpa [#allocation3], 1
    %s1034 = scalar_lea.sflag [#allocation3], 1
    %1035 = vsyncpa %s1034, 1
    %1036 = vsyncpa [#allocation5], 1
    %s1037 = scalar_lea.sflag [#allocation5], 1
    %1038 = vsyncpa %s1037, 1

</llo_original>
